<compile_context>
chip_gen: v5e
topology: v5e:2x2
jax: 0.10.0
libtpu: 0.0.40
codegen_flags: <defaults>
</compile_context>

<pallas_src>
import jax
import jax.numpy as jnp
from jax.experimental import pallas as pl
from jax.experimental.pallas import tpu as pltpu


def _round_up(x, m):
    return ((x + m - 1) // m) * m


# Feature-check the pipeline_mode kwarg once (pure BlockSpec construction, no compile);
# fall back to default double-buffering if this jax build predates it.
try:
    pl.BlockSpec((8, 128), lambda i: (i, 0), pipeline_mode=pl.Buffered(1))
    _RESIDENT_KW = dict(pipeline_mode=pl.Buffered(1))
except Exception:  # pragma: no cover
    _RESIDENT_KW = {}


def _policy_kernel(x_ref, w1_ref, b1_ref, w2_ref, epi_ref, out_ref):
    # hidden = relu(x @ W1 + b1)   -- bf16 operands, f32 MXU accumulation
    h = jnp.dot(x_ref[...], w1_ref[...], preferred_element_type=jnp.float32) + b1_ref[...]
    h = jnp.maximum(h, 0.0)

    epi = epi_ref[...]              # (3, a_pad): row0=b2, row1=scale, row2=shift

    # logits = h @ W2 + b2
    logits = jnp.dot(h.astype(jnp.bfloat16), w2_ref[...],
                     preferred_element_type=jnp.float32) + epi[0:1, :]

    # Folded affine epilogue (exact for the binary {0,1} scaled-action mask):
    #   masked cols:   sigmoid*2*bound - 1     unmasked cols: sigmoid*bound
    out_ref[...] = (jax.nn.sigmoid(logits) * epi[1:2, :] + epi[2:3, :]).astype(out_ref.dtype)


def make_policy_net(w1, b1, w2, b2, scaled_mask, action_bound, *,
                    batch_tile=128, feature_align=128, out_dtype=jnp.float32):
    """Build a jitted forward(x) closure. All parameter prep happens here, once.

    w1: (state_dim, hidden)   b1: (1, hidden)
    w2: (hidden, action_dim)  b2: (1, action_dim)
    scaled_mask: (1, action_dim) binary {0,1} marking scaled_action_indices.
    feature_align: 128 (all chips) or 256 (v6e/v7x, compute-bound) lane padding.
    out_dtype: set to jnp.bfloat16 if downstream accepts it (halves writeback bytes).
    """
    state_dim, hidden_dim = w1.shape
    _, action_dim = w2.shape

    h_pad = _round_up(hidden_dim, feature_align)
    a_pad = _round_up(action_dim, feature_align)

    # --- one-time padding / casting (hoisted out of the per-call path) ----------------
    # Zero padding is semantics-preserving: padded hidden cols stay 0 through relu and
    # the matching W2 rows are 0; padded batch rows / action cols are sliced off.
    w1_p = jnp.zeros((state_dim, h_pad), jnp.bfloat16).at[:, :hidden_dim].set(
        w1.astype(jnp.bfloat16))
    b1_p = jnp.zeros((1, h_pad), jnp.float32).at[:, :hidden_dim].set(b1.astype(jnp.float32))
    w2_p = jnp.zeros((h_pad, a_pad), jnp.bfloat16).at[:hidden_dim, :action_dim].set(
        w2.astype(jnp.bfloat16))

    mask_p = jnp.zeros((1, a_pad), jnp.float32).at[:, :action_dim].set(
        scaled_mask.astype(jnp.float32))
    b2_p = jnp.zeros((1, a_pad), jnp.float32).at[:, :action_dim].set(b2.astype(jnp.float32))
    # Packed epilogue: row0 = b2, row1 = scale = bound*(1+mask), row2 = shift = -mask.
    epi = jnp.concatenate(
        [b2_p, jnp.float32(action_bound) * (1.0 + mask_p), -mask_p], axis=0)

    out_itemsize = jnp.dtype(out_dtype).itemsize

    @jax.jit
    def forward(x):
        batch = x.shape[0]
        assert x.shape[1] == state_dim

        # Batch tiling: keep >=2 grid steps whenever the batch spans >=16 rows so the
        # "parallel" axis can shard across both TensorCores on v7x.
        b8 = _round_up(max(batch, 8), 8)
        if b8 > batch_tile:
            tb = batch_tile
        elif b8 >= 16:
            tb = _round_up(pl.cdiv(b8, 2), 8)
        else:
            tb = 8
        b_pad = _round_up(b8, tb)
        grid = (b_pad // tb,)

        # Per-call work on x only: cast + pad the batch axis.
        x_p = jnp.pad(x.astype(jnp.bfloat16), ((0, b_pad - batch), (0, 0)))

        def const_map(i):
            return (0, 0)

        in_specs = [
            pl.BlockSpec((tb, state_dim), lambda i: (i, 0)),             # x tile (pipelined)
            pl.BlockSpec((state_dim, h_pad), const_map, **_RESIDENT_KW),  # W1 (resident)
            pl.BlockSpec((1, h_pad), const_map, **_RESIDENT_KW),          # b1 (resident)
            pl.BlockSpec((h_pad, a_pad), const_map, **_RESIDENT_KW),      # W2 (resident)
            pl.BlockSpec((3, a_pad), const_map, **_RESIDENT_KW),          # b2/scale/shift
        ]
        out_spec = pl.BlockSpec((tb, a_pad), lambda i: (i, 0))

        # Advisory cost estimate so XLA can schedule around this small custom call.
        flops = 2 * b_pad * (state_dim * h_pad + h_pad * a_pad)
        bytes_accessed = (x_p.size * 2 + w1_p.size * 2 + w2_p.size * 2
                          + (b1_p.size + epi.size) * 4 + b_pad * a_pad * out_itemsize)
        cost = pl.CostEstimate(flops=flops, transcendentals=b_pad * a_pad,
                               bytes_accessed=bytes_accessed)

        # VMEM budget: double-buffered x/out tiles, single-buffered residents, plus the
        # in-kernel intermediates (h f32, h bf16, logits f32).
        vmem_est = (
            2 * tb * max(state_dim, 128) * 2            # x tiles (bf16, lane-padded)
            + 2 * tb * a_pad * out_itemsize             # out tiles
            + (state_dim * h_pad + h_pad * a_pad) * 2   # resident bf16 weights (1 buffer)
            + (h_pad + 3 * a_pad) * 4                   # resident b1 + packed epilogue
            + tb * h_pad * 4 + tb * h_pad * 2           # h (f32) + h (bf16)
            + tb * a_pad * 4                            # logits (f32)
        )
        # Always pass an explicit limit (v5e's default scoped VMEM is 16 MiB); cap at the
        # 64 MiB of one v7x TensorCore. Weights large enough to break that cap would need
        # hidden-dim K-tiling, which policy-net sizes never reach.
        vmem_limit = int(min(max(2 * vmem_est + (2 << 20), 32 << 20), 64 << 20))

        out_padded = pl.pallas_call(
            _policy_kernel,
            out_shape=jax.ShapeDtypeStruct((b_pad, a_pad), out_dtype),
            grid=grid,
            in_specs=in_specs,
            out_specs=out_spec,
            compiler_params=pltpu.CompilerParams(
                dimension_semantics=("parallel",),
                vmem_limit_bytes=vmem_limit),
            cost_estimate=cost,
        )(x_p, w1_p, b1_p, w2_p, epi)

        # Padded rows / action columns (sigmoid(0)*bound garbage) are dropped here;
        # never read the padded output directly.
        return out_padded[:batch, :action_dim]

    return forward


def _reference(x, w1, b1, w2, b2, scaled_mask, action_bound):
    h = jnp.maximum(x @ w1 + b1, 0.0)
    a = jax.nn.sigmoid(h @ w2 + b2) * action_bound
    return jnp.where(scaled_mask > 0.5, a * 2.0 - 1.0, a)


if __name__ == "__main__":
    # Small, forward-consistent shapes.
    batch = 4
    state_dim = 16
    hidden_dim = 32
    action_dim = 8
    action_bound = 2.0
    scaled_action_indices = [0, 3]  # these action columns get mapped to [-bound, bound)

    key = jax.random.PRNGKey(0)
    k_x, k_w1, k_b1, k_w2, k_b2 = jax.random.split(key, 5)

    # Deterministic synthetic parameters (PyTorch Linear-like uniform init ranges).
    lim1 = 1.0 / (state_dim ** 0.5)
    lim2 = 1.0 / (hidden_dim ** 0.5)
    w1 = jax.random.uniform(k_w1, (state_dim, hidden_dim), jnp.float32, -lim1, lim1)
    b1 = jax.random.uniform(k_b1, (1, hidden_dim), jnp.float32, -lim1, lim1)
    w2 = jax.random.uniform(k_w2, (hidden_dim, action_dim), jnp.float32, -lim2, lim2)
    b2 = jax.random.uniform(k_b2, (1, action_dim), jnp.float32, -lim2, lim2)

    x = jax.random.normal(k_x, (batch, state_dim), jnp.float32)

    scaled_mask = jnp.zeros((1, action_dim), jnp.float32)
    scaled_mask = scaled_mask.at[0, jnp.array(scaled_action_indices)].set(1.0)

    forward = make_policy_net(w1, b1, w2, b2, scaled_mask, action_bound)
    out = jax.block_until_ready(forward(x))

    ref = _reference(x, w1, b1, w2, b2, scaled_mask, action_bound)
    assert out.shape == (batch, action_dim)
    # bf16 matmul operands with f32 accumulation -> loosened tolerance vs f32 ref.
    assert jnp.allclose(out, ref, atol=2e-2, rtol=2e-2), jnp.max(jnp.abs(out - ref))

    print("KERNEL_OK")
</pallas_src>

<mosaic_0001>
module attributes {stable_mosaic.version = 11 : i64} {
  func.func @_policy_kernel(%arg0: i32, %arg1: memref<8x16xbf16, #tpu.memory_space<vmem>>, %arg2: memref<16x128xbf16, #tpu.memory_space<vmem>>, %arg3: memref<1x128xf32, #tpu.memory_space<vmem>>, %arg4: memref<128x128xbf16, #tpu.memory_space<vmem>>, %arg5: memref<3x128xf32, #tpu.memory_space<vmem>>, %arg6: memref<8x128xf32, #tpu.memory_space<vmem>>) attributes {dimension_semantics = [#tpu.dimension_semantics<parallel>], iteration_bounds = array<i64: 1>, scalar_prefetch = 0 : i64, scratch_operands = 0 : i64, tpu.core_type = #tpu.core_type<tc>, window_params = [{transform_indices = @transform_0, window_bounds = array<i64: 8, 16>}, {pipeline_mode = #tpu.pipeline_mode<synchronous>, transform_indices = @transform_1, window_bounds = array<i64: 16, 128>}, {pipeline_mode = #tpu.pipeline_mode<synchronous>, transform_indices = @transform_2, window_bounds = array<i64: 1, 128>}, {pipeline_mode = #tpu.pipeline_mode<synchronous>, transform_indices = @transform_3, window_bounds = array<i64: 128, 128>}, {pipeline_mode = #tpu.pipeline_mode<synchronous>, transform_indices = @transform_4, window_bounds = array<i64: 3, 128>}, {transform_indices = @transform_5, window_bounds = array<i64: 8, 128>}]} {
    %c0 = arith.constant 0 : index
    %c0_0 = arith.constant 0 : index
    %0 = vector.load %arg1[%c0, %c0_0] : memref<8x16xbf16, #tpu.memory_space<vmem>>, vector<8x16xbf16>
    %c0_1 = arith.constant 0 : index
    %c0_2 = arith.constant 0 : index
    %1 = vector.load %arg2[%c0_1, %c0_2] : memref<16x128xbf16, #tpu.memory_space<vmem>>, vector<16x128xbf16>
    %cst = arith.constant dense<0.000000e+00> : vector<8x128xf32>
    %2 = tpu.matmul %0, %1, %cst {dimension_numbers = #tpu.dot_dimension_numbers<[1], [0], [0], [1], [0, 0, 1, 1], [], []>} : vector<8x16xbf16>, vector<16x128xbf16>, vector<8x128xf32> -> vector<8x128xf32>
    %c0_3 = arith.constant 0 : index
    %c0_4 = arith.constant 0 : index
    %3 = vector.load %arg3[%c0_3, %c0_4] : memref<1x128xf32, #tpu.memory_space<vmem>>, vector<1x128xf32>
    %4 = vector.broadcast %3 : vector<1x128xf32> to vector<8x128xf32>
    %5 = arith.addf %2, %4 : vector<8x128xf32>
    %cst_5 = arith.constant 0.000000e+00 : f32
    %6 = vector.broadcast %cst_5 : f32 to vector<8x128xf32>
    %7 = arith.maximumf %5, %6 : vector<8x128xf32>
    %c0_6 = arith.constant 0 : index
    %c0_7 = arith.constant 0 : index
    %8 = vector.load %arg5[%c0_6, %c0_7] : memref<3x128xf32, #tpu.memory_space<vmem>>, vector<3x128xf32>
    %9 = arith.truncf %7 : vector<8x128xf32> to vector<8x128xbf16>
    %c0_8 = arith.constant 0 : index
    %c0_9 = arith.constant 0 : index
    %10 = vector.load %arg4[%c0_8, %c0_9] : memref<128x128xbf16, #tpu.memory_space<vmem>>, vector<128x128xbf16>
    %cst_10 = arith.constant dense<0.000000e+00> : vector<8x128xf32>
    %11 = tpu.matmul %9, %10, %cst_10 {dimension_numbers = #tpu.dot_dimension_numbers<[1], [0], [0], [1], [0, 0, 1, 1], [], []>} : vector<8x128xbf16>, vector<128x128xbf16>, vector<8x128xf32> -> vector<8x128xf32>
    %12 = vector.extract_strided_slice %8 {offsets = [0, 0], sizes = [1, 128], strides = [1, 1]} : vector<3x128xf32> to vector<1x128xf32>
    %13 = vector.broadcast %12 : vector<1x128xf32> to vector<8x128xf32>
    %14 = arith.addf %11, %13 : vector<8x128xf32>
    %15 = arith.negf %14 : vector<8x128xf32>
    %16 = math.exp %15 : vector<8x128xf32>
    %cst_11 = arith.constant 1.000000e+00 : f32
    %17 = vector.broadcast %cst_11 : f32 to vector<8x128xf32>
    %18 = arith.addf %17, %16 : vector<8x128xf32>
    %19 = arith.divf %17, %18 : vector<8x128xf32>
    %20 = vector.extract_strided_slice %8 {offsets = [1, 0], sizes = [1, 128], strides = [1, 1]} : vector<3x128xf32> to vector<1x128xf32>
    %21 = vector.broadcast %20 : vector<1x128xf32> to vector<8x128xf32>
    %22 = arith.mulf %19, %21 : vector<8x128xf32>
    %23 = vector.extract_strided_slice %8 {offsets = [2, 0], sizes = [1, 128], strides = [1, 1]} : vector<3x128xf32> to vector<1x128xf32>
    %24 = vector.broadcast %23 : vector<1x128xf32> to vector<8x128xf32>
    %25 = arith.addf %22, %24 : vector<8x128xf32>
    %c0_12 = arith.constant 0 : index
    %c0_13 = arith.constant 0 : index
    %26 = vector.load %arg6[%c0_12, %c0_13] : memref<8x128xf32, #tpu.memory_space<vmem>>, vector<8x128xf32>
    tpu.vector_store %arg6[%c0_12, %c0_13], %25 {strides = array<i32>} : memref<8x128xf32, #tpu.memory_space<vmem>>, vector<8x128xf32>,
    return
  }
  func.func @transform_0(%arg0: i32) -> (i32, i32) {
    %c0_i32 = arith.constant 0 : i32
    %c0_i32_0 = arith.constant 0 : i32
    return %arg0, %c0_i32 : i32, i32
  }
  func.func @transform_1(%arg0: i32) -> (i32, i32) {
    %c0_i32 = arith.constant 0 : i32
    %c0_i32_0 = arith.constant 0 : i32
    %c0_i32_1 = arith.constant 0 : i32
    return %c0_i32, %c0_i32_0 : i32, i32
  }
  func.func @transform_2(%arg0: i32) -> (i32, i32) {
    %c0_i32 = arith.constant 0 : i32
    %c0_i32_0 = arith.constant 0 : i32
    %c0_i32_1 = arith.constant 0 : i32
    return %c0_i32, %c0_i32_0 : i32, i32
  }
  func.func @transform_3(%arg0: i32) -> (i32, i32) {
    %c0_i32 = arith.constant 0 : i32
    %c0_i32_0 = arith.constant 0 : i32
    %c0_i32_1 = arith.constant 0 : i32
    return %c0_i32, %c0_i32_0 : i32, i32
  }
  func.func @transform_4(%arg0: i32) -> (i32, i32) {
    %c0_i32 = arith.constant 0 : i32
    %c0_i32_0 = arith.constant 0 : i32
    %c0_i32_1 = arith.constant 0 : i32
    return %c0_i32, %c0_i32_0 : i32, i32
  }
  func.func @transform_5(%arg0: i32) -> (i32, i32) {
    %c0_i32 = arith.constant 0 : i32
    %c0_i32_0 = arith.constant 0 : i32
    return %arg0, %c0_i32 : i32, i32
  }
}

</mosaic_0001>

<llo_original>
// kernel: forward.1
$region0: #{forward.1}
  #allocation0 [shape = 'u32[]', space=smem, size = 0x4, offset = 0x4, fixed_abs, tag = 'smem constant byte address 0x4 - core index']
  #allocation1 [shape = 'u32[72,128]{1,0:T(1,128)}', space=vmem, size = 0x9000, scoped, tag = 'internal scratch']
  %s0 = inlined_call_operand.vmem [shape: bf16[8,16], index: 0, kind: input, shape index: {}]
  %s1 = inlined_call_operand.vmem [shape: bf16[16,128], index: 1, kind: input, shape index: {}]
  %s2 = inlined_call_operand.vmem [shape: f32[1,128], index: 2, kind: input, shape index: {}]
  %s3 = inlined_call_operand.hbm [shape: bf16[128,128], index: 3, kind: input, shape index: {}]
  %s4 = inlined_call_operand.vmem [shape: f32[3,128], index: 4, kind: input, shape index: {}]
  %s5 = inlined_call_operand.vmem [shape: f32[8,128], index: 5, kind: output, shape index: {}]
  %s6 = sld [smem:[#allocation0]]
  $region34: #{forward.1} parent=0
    _
  %s8 = ssub.s32 1, %s6
  %s9 = scalar_select 0, %s8, %s6
  $region1: #{forward.1} parent=0
    #allocation2 [shape = 'u8[32768]{0}', space=vmem, size = 0x8000, scoped, tag = 'input window, operand 3, single buffered']
    #allocation3 [shape = 's32[1]{0}', space=sflag, size = 0x4, scoped, tag = 'scoped memory for forward.1']
    %10 = vsyncpa [#allocation3], 0
    // Predicated region
    $region2: #{forward.1} parent=1 // pred_check
      _
    $region3: #{forward.1} parent=1 // pred_check_branch
      %12 = sbr.rel (0) target = $region5
    $region4: #{forward.1} parent=1 // pred_region
      _
    $region5: #{forward.1} parent=1 // pred_fallthru
      _
    // Predicated region
    $region6: #{forward.1} parent=1 // pred_check
      _
    $region7: #{forward.1} parent=1 // pred_check_branch
      %14 = sbr.rel (0) target = $region9
    $region8: #{forward.1} parent=1 // pred_region
      _
    $region9: #{forward.1} parent=1 // pred_fallthru
      _
    // Predicated region
    $region10: #{forward.1} parent=1 // pred_check
      _
    $region11: #{forward.1} parent=1 // pred_check_branch
      %16 = sbr.rel (0) target = $region13
    $region12: #{forward.1} parent=1 // pred_region
      _
    $region13: #{forward.1} parent=1 // pred_fallthru
      _
    // Predicated region
    $region14: #{forward.1} parent=1 // pred_check
      _
    $region15: #{forward.1} parent=1 // pred_check_branch
      %18 = sbr.rel (0) target = $region17
    $region16: #{forward.1} parent=1 // pred_region
      %20 = vsyncadd [#allocation3], 0
      %s21 = sshll.u32 %s3, 4
      %s22 = int_to_ptr.hbm [resolvable:$true] %s21
      %s23 = sshll.u32 [#allocation2], 4
      %s24 = int_to_ptr.vmem [resolvable:$true] %s23
      %29 = dma.hbm_to_vmem [thread:$0]  %s22, 1024, %s24, [#allocation3], 64, 64, 4
    $region17: #{forward.1} parent=1 // pred_fallthru
      _
    // Predicated region
    $region18: #{forward.1} parent=1 // pred_check
      _
    $region19: #{forward.1} parent=1 // pred_check_branch
      %31 = sbr.rel (0) target = $region21
    $region20: #{forward.1} parent=1 // pred_region
      _
    $region21: #{forward.1} parent=1 // pred_fallthru
      _
    // Predicated region
    $region22: #{forward.1} parent=1 // pred_check
      _
    $region23: #{forward.1} parent=1 // pred_check_branch
      %33 = sbr.rel (0) target = $region25
    $region24: #{forward.1} parent=1 // pred_region
      %35 = dma.done [#allocation3], 1024
    $region25: #{forward.1} parent=1 // pred_fallthru
      _
    %v37 = vld [vmem:[%s0] sm:$0xf]
    %v38 = vld [vmem:[%s1] sm:$0xf]
    %v39 = vld [vmem:[%s1 + $0x4] sm:$0xf]
    %v40 = vld [vmem:[%s2] sm:$0x1]
    %v42 = vperm.slane %v40, 0
    %v46 = vunpack.c.l.b16 %v38
    %v47 = vunpack.c.l.b16 %v39
    %v48 = vpack.c.b16 %v47, %v46
    %vm50 = vcmask 130048
    %v52 = vsel %vm50, %v37, 0
    %54 = vmatpush.bf16.msra.mxu0 0
    %55 = vmatpush.bf16.msra.mxu0 0
    %56 = vmatpush.bf16.msra.mxu0 0
    %57 = vmatpush.bf16.msra.mxu0 0
    %58 = vmatpush.bf16.msra.mxu0 0
    %59 = vmatpush.bf16.msra.mxu0 0
    %60 = vmatpush.bf16.msra.mxu0 0
    %61 = vmatpush.bf16.msra.mxu0 %v48
    %62 = vmatmul.bf16.gmra.mxu0 %v52
    %v63 = vpop.f32.mrf.mxu0
    %v64 = vadd.f32 %v42, %v63
    %v65 = vpop.f32.mrf.mxu0
    %66 = vdwg.mxu0
    %v67 = vmax.f32 %v64, 0.0
    %v68 = vld [vmem:[%s4] sm:$0x7]
    %v69 = vpack.c.bf16 %v67, %v67
    %v70 = vld [vmem:[#allocation2] sm:$0xf]
    %v71 = vld [vmem:[#allocation2 + $0x4] sm:$0xf]
    %v72 = vld [vmem:[#allocation2 + $0x8] sm:$0xf]
    %v73 = vld [vmem:[#allocation2 + $0xc] sm:$0xf]
    %v74 = vld [vmem:[#allocation2 + $0x10] sm:$0xf]
    %v75 = vld [vmem:[#allocation2 + $0x14] sm:$0xf]
    %v76 = vld [vmem:[#allocation2 + $0x18] sm:$0xf]
    %v77 = vld [vmem:[#allocation2 + $0x1c] sm:$0xf]
    %v78 = vld [vmem:[#allocation2 + $0x20] sm:$0xf]
    %v79 = vld [vmem:[#allocation2 + $0x24] sm:$0xf]
    %v80 = vld [vmem:[#allocation2 + $0x28] sm:$0xf]
    %v81 = vld [vmem:[#allocation2 + $0x2c] sm:$0xf]
    %v82 = vld [vmem:[#allocation2 + $0x30] sm:$0xf]
    %v83 = vld [vmem:[#allocation2 + $0x34] sm:$0xf]
    %v84 = vld [vmem:[#allocation2 + $0x38] sm:$0xf]
    %v85 = vld [vmem:[#allocation2 + $0x3c] sm:$0xf]
    %v86 = vperm.slane %v68, 0
    %v103 = vunpack.c.l.b16 %v70
    %v104 = vunpack.c.l.b16 %v71
    %v105 = vunpack.c.l.b16 %v72
    %v106 = vunpack.c.l.b16 %v73
    %v107 = vunpack.c.l.b16 %v74
    %v108 = vunpack.c.l.b16 %v75
    %v109 = vunpack.c.l.b16 %v76
    %v110 = vunpack.c.l.b16 %v77
    %v111 = vunpack.c.l.b16 %v78
    %v112 = vunpack.c.l.b16 %v79
    %v113 = vunpack.c.l.b16 %v80
    %v114 = vunpack.c.l.b16 %v81
    %v115 = vunpack.c.l.b16 %v82
    %v116 = vunpack.c.l.b16 %v83
    %v117 = vunpack.c.l.b16 %v84
    %v118 = vunpack.c.l.b16 %v85
    %v119 = vpack.c.b16 %v104, %v103
    %v120 = vpack.c.b16 %v106, %v105
    %v121 = vpack.c.b16 %v108, %v107
    %v122 = vpack.c.b16 %v110, %v109
    %v123 = vpack.c.b16 %v112, %v111
    %v124 = vpack.c.b16 %v114, %v113
    %v125 = vpack.c.b16 %v116, %v115
    %v126 = vpack.c.b16 %v118, %v117
    %135 = vmatpush.bf16.msra.mxu0 %v126
    %136 = vmatpush.bf16.msra.mxu0 %v125
    %137 = vmatpush.bf16.msra.mxu0 %v124
    %138 = vmatpush.bf16.msra.mxu0 %v123
    %139 = vmatpush.bf16.msra.mxu0 %v122
    %140 = vmatpush.bf16.msra.mxu0 %v121
    %141 = vmatpush.bf16.msra.mxu0 %v120
    %142 = vmatpush.bf16.msra.mxu0 %v119
    %143 = vmatmul.bf16.gmra.mxu0 %v69
    %v144 = vpop.f32.mrf.mxu0
    %v145 = vadd.f32 %v86, %v144
    %v146 = vpop.f32.mrf.mxu0
    %147 = vdwg.mxu0
    %v148 = vxor.u32 %v145, 2147483648
    %v149 = vmul.f32 %v148, 1.442695
    %v150 = vpow.pop %v149
    %v151 = vadd.f32 %v150, 1.0
    %v152 = vrcp.pop %v151
    %v153 = vmul.f32 %v151, %v152
    %v154 = vsub.f32 1.0, %v153
    %v155 = vmul.f32 %v152, %v154
    %v156 = vadd.f32 %v152, %v155
    %vm157 = vweird.f32 %v151
    %vm158 = vweird.f32 %v152
    %vm159 = vmor %vm157, %vm158
    %v160 = vsel %vm159, %v152, %v156
    %v161 = vand.u32 2147483647, %v151
    %vm162 = vcmp.eq.f32.partialorder %v161, 8.507059e+37
    %v163 = vand.u32 %v151, 2147483648
    %v164 = vor.u32 1.1754944e-38, %v163
    %v165 = vsel %vm162, %v164, %v160
    %v166 = vmul.f32 1.0, %v165
    %v167 = vperm.slane %v68, 1
    %v168 = vmul.f32 %v166, %v167
    %v169 = vperm.slane %v68, 2
    %v170 = vadd.f32 %v168, %v169
    %171 = vst [vmem:[%s5] sm:$0xff] %v170
    // Predicated region
    $region26: #{forward.1} parent=1 // pred_check
      _
    $region27: #{forward.1} parent=1 // pred_check_branch
      %173 = sbr.rel (0) target = $region29
    $region28: #{forward.1} parent=1 // pred_region
      _
    $region29: #{forward.1} parent=1 // pred_fallthru
      _
    // Predicated region
    $region30: #{forward.1} parent=1 // pred_check
      _
    $region31: #{forward.1} parent=1 // pred_check_branch
      %175 = sbr.rel (0) target = $region33
    $region32: #{forward.1} parent=1 // pred_region
      _
    $region33: #{forward.1} parent=1 // pred_fallthru
      _
    %176 = vsyncpa [#allocation3], 1

</llo_original>
